<compile_context>
chip_gen: v7x
topology: tpu7x:2x2x1
jax: 0.10.0
libtpu: 0.0.40
codegen_flags: <defaults>
</compile_context>

<pallas_src>
import functools
import math

import jax
import jax.numpy as jnp
from jax.experimental import pallas as pl
from jax.experimental.pallas import tpu as pltpu

_LANE = 128
_SUBLANE = 8


def _round_up(x, m):
    return (x + m - 1) // m * m


def _fused_mlp_kernel(x_ref, w_ref, b_ref, o_ref, h_ref, *, num_layers):
    """One grid step = one (batch-tile, layer) pair.

    x_ref: [TM, Dp]     f32  zero-padded input tile (same block for every l)
    w_ref: [1, Dp, Dp]  bf16 BN-folded weight of layer l (auto double-buffered)
    b_ref: [1, 1, Dp]   f32  BN-folded bias of layer l
    o_ref: [TM, Dp]     f32  output tile (block constant across l; stored after last l)
    h_ref: [TM, Dp]     f32  VMEM scratch carrying the activation across layers
    """
    l = pl.program_id(1)

    @pl.when(l == 0)
    def _():
        h_ref[...] = x_ref[...].astype(jnp.float32)

    # bf16 operands, f32 accumulation on the MXU.
    y = jnp.dot(h_ref[...].astype(jnp.bfloat16), w_ref[0],
                preferred_element_type=jnp.float32)
    y = y + b_ref[0]  # f32 bias (BN already folded)

    @pl.when(l < num_layers - 1)
    def _():
        # Hidden layer: BN folded into W/b; dropout is identity in eval mode.
        h_ref[...] = jnp.maximum(y, 0.0)

    @pl.when(l == num_layers - 1)
    def _():
        o_ref[...] = y.astype(o_ref.dtype)


class MLP:
    """JAX/Pallas mirror of the PyTorch MLP module (eval-mode forward)."""

    def __init__(self, dim_list, dropout_list=None, *, key=None, dtype=jnp.float32):
        if dropout_list:
            assert len(dropout_list) == len(dim_list) - 2
            self.dropout_list = list(dropout_list)
        else:
            self.dropout_list = [0.0 for _ in range(len(dim_list) - 2)]
        self.dim_list = list(dim_list)
        self.dtype = dtype
        self.d_in = dim_list[0]
        self.d_out = dim_list[-1]

        if key is None:
            key = jax.random.PRNGKey(0)

        n_layers = len(dim_list) - 1
        self.n_layers = n_layers
        eps = 1e-5

        # ---- Raw params (kept in f32 for the pure-JAX reference) --------------------
        # PyTorch default Linear init: U(-1/sqrt(fan_in), 1/sqrt(fan_in))
        self.weights_t = []   # transposed: [D_in, D_out]
        self.biases = []      # [1, D_out]
        keys = jax.random.split(key, 2 * n_layers)
        for i in range(n_layers):
            d_i, d_o = dim_list[i], dim_list[i + 1]
            bound = 1.0 / math.sqrt(d_i)
            w = jax.random.uniform(keys[2 * i], (d_o, d_i), dtype=jnp.float32,
                                   minval=-bound, maxval=bound)
            b = jax.random.uniform(keys[2 * i + 1], (d_o,), dtype=jnp.float32,
                                   minval=-bound, maxval=bound)
            self.weights_t.append(jnp.transpose(w))          # [D_in, D_out]
            self.biases.append(b.reshape(1, d_o))

        # BatchNorm1d (fresh init): gamma=1, beta=0, mean=0, var=1 -> per-feature affine.
        self.bn_scales = []
        self.bn_shifts = []
        for d in dim_list[1:-1]:
            gamma = jnp.ones((1, d), dtype=jnp.float32)
            beta = jnp.zeros((1, d), dtype=jnp.float32)
            running_mean = jnp.zeros((1, d), dtype=jnp.float32)
            running_var = jnp.ones((1, d), dtype=jnp.float32)
            scale = gamma / jnp.sqrt(running_var + eps)
            shift = beta - running_mean * scale
            self.bn_scales.append(scale)
            self.bn_shifts.append(shift)

        # ---- Folded (f32) -> padded -> stacked params consumed by the kernel --------
        d_pad = _round_up(max(dim_list), _LANE)
        self.d_pad = d_pad
        w_stack = []
        b_stack = []
        for i in range(n_layers):
            d_i, d_o = dim_list[i], dim_list[i + 1]
            if i != n_layers - 1:
                scale = self.bn_scales[i]          # [1, d_o]
                shift = self.bn_shifts[i]          # [1, d_o]
            else:
                scale = jnp.ones((1, d_o), dtype=jnp.float32)
                shift = jnp.zeros((1, d_o), dtype=jnp.float32)
            w_fold = self.weights_t[i] * scale                 # fold in f32
            b_fold = self.biases[i] * scale + shift
            w_pad = jnp.zeros((d_pad, d_pad), jnp.float32).at[:d_i, :d_o].set(w_fold)
            b_pad = jnp.zeros((1, d_pad), jnp.float32).at[:, :d_o].set(b_fold)
            w_stack.append(w_pad)
            b_stack.append(b_pad)
        # Weights in bf16 (halved HBM/VMEM traffic, fast MXU path); biases stay f32.
        self.w_stack = jnp.stack(w_stack).astype(jnp.bfloat16)   # [L, Dp, Dp] bf16
        self.b_stack = jnp.stack(b_stack)                         # [L, 1, Dp]  f32

        # Single jitted forward: pad -> one fused pallas_call -> slice.
        self._forward = jax.jit(self._forward_impl)

    def _forward_impl(self, x, w_stack, b_stack):
        n, d_in = x.shape
        num_layers, d_pad, _ = w_stack.shape

        # Batch tiling: one tile for small batches (no extra per-step overhead at n=8);
        # TM=256 tiles once the batch is large (feeds the 2x256^2 MXU, and the parallel
        # batch axis shards across v7x's two TensorCores).
        if n <= 256:
            tm = _round_up(max(n, _SUBLANE), _SUBLANE)
            n_pad = tm
        else:
            tm = 256
            n_pad = _round_up(n, tm)
        num_m = n_pad // tm

        # Zero-pad input to the lane-dense padded shape (tiny; 4 KiB at this size).
        x_pad = jnp.zeros((n_pad, d_pad), jnp.float32).at[:n, :d_in].set(
            x.astype(jnp.float32))

        flops = 2 * n_pad * d_pad * d_pad * num_layers
        bytes_accessed = (4 * 2 * n_pad * d_pad              # x in + out (f32)
                          + 2 * num_layers * d_pad * d_pad   # weights (bf16)
                          + 4 * num_layers * d_pad)          # biases (f32)

        # Explicit VMEM budget with headroom: double-buffered weight/bias/in/out blocks
        # plus the activation scratch. Min 8 MiB, capped at v7x's 64 MiB physical VMEM.
        vmem_needed = (2 * d_pad * d_pad * 2      # 2 x bf16 weight block
                       + 2 * d_pad * 4            # 2 x f32 bias block
                       + 2 * 2 * tm * d_pad * 4   # 2 x (in + out) f32 blocks
                       + tm * d_pad * 4)          # activation scratch
        vmem_limit = min(max(int(1.5 * vmem_needed) + (2 << 20), 8 << 20), 64 << 20)

        out_pad = pl.pallas_call(
            functools.partial(_fused_mlp_kernel, num_layers=num_layers),
            out_shape=jax.ShapeDtypeStruct((n_pad, d_pad), jnp.float32),
            grid_spec=pltpu.PrefetchScalarGridSpec(
                num_scalar_prefetch=0,
                grid=(num_m, num_layers),
                in_specs=[
                    pl.BlockSpec((tm, d_pad), lambda m, l: (m, 0)),
                    pl.BlockSpec((1, d_pad, d_pad), lambda m, l: (l, 0, 0)),
                    pl.BlockSpec((1, 1, d_pad), lambda m, l: (l, 0, 0)),
                ],
                out_specs=pl.BlockSpec((tm, d_pad), lambda m, l: (m, 0)),
                scratch_shapes=[pltpu.VMEM((tm, d_pad), jnp.float32)],
            ),
            compiler_params=pltpu.CompilerParams(
                dimension_semantics=("parallel", "arbitrary"),
                vmem_limit_bytes=vmem_limit,
            ),
            cost_estimate=pl.CostEstimate(flops=flops, transcendentals=0,
                                          bytes_accessed=bytes_accessed),
        )(x_pad, w_stack, b_stack)

        return out_pad[:n, :self.d_out]

    def __call__(self, x):
        return self._forward(x, self.w_stack, self.b_stack)


def _reference_forward_matched(mlp, x):
    """Pure-JAX reference using the same folded/padded bf16 weights + f32 accumulation
    as the kernel (checks the kernel structure: grid carry, padding, folding)."""
    n, d_in = x.shape
    h = jnp.zeros((n, mlp.d_pad), jnp.float32).at[:, :d_in].set(x.astype(jnp.float32))
    for l in range(mlp.n_layers):
        y = jnp.dot(h.astype(jnp.bfloat16), mlp.w_stack[l],
                    preferred_element_type=jnp.float32) + mlp.b_stack[l]
        if l != mlp.n_layers - 1:
            y = jnp.maximum(y, 0.0)
        h = y
    return h[:, :mlp.d_out]


def _reference_forward_f32(mlp, x):
    """Pure-JAX f32 reference of the original (unfolded) module semantics."""
    h = x.astype(jnp.float32)
    for i in range(mlp.n_layers):
        h = h @ mlp.weights_t[i] + mlp.biases[i]
        if i != mlp.n_layers - 1:
            h = h * mlp.bn_scales[i] + mlp.bn_shifts[i]
            h = jnp.maximum(h, 0.0)
    return h


if __name__ == "__main__":
    # Small shapes consistent with the module: batch=8, dims [16 -> 32 -> 32 -> 8]
    dim_list = [16, 32, 32, 8]
    batch = 8

    key = jax.random.PRNGKey(0)
    k_param, k_x = jax.random.split(key)

    mlp = MLP(dim_list, dropout_list=[0.1, 0.2], key=k_param)
    x = jax.random.normal(k_x, (batch, dim_list[0]), dtype=jnp.float32)

    out = mlp(x)
    out = jax.block_until_ready(out)
    assert out.shape == (batch, dim_list[-1]), out.shape

    # Exact-arithmetic check (same bf16 weights / f32 accumulation as the kernel).
    ref_matched = _reference_forward_matched(mlp, x)
    assert jnp.allclose(out, ref_matched, atol=1e-4, rtol=1e-4), \
        "mismatch vs bf16-matched JAX reference"

    # Loose check vs the full-f32 unfolded reference (bf16 weight rounding only).
    ref_f32 = _reference_forward_f32(mlp, x)
    assert jnp.allclose(out, ref_f32, atol=5e-2, rtol=5e-2), \
        "mismatch vs f32 JAX reference"

    print("KERNEL_OK")
</pallas_src>

<mosaic_0001>
module attributes {stable_mosaic.version = 11 : i64} {
  func.func @_fused_mlp_kernel(%arg0: i32, %arg1: i32, %arg2: memref<8x128xf32, #tpu.memory_space<vmem>>, %arg3: memref<1x128x128xbf16, #tpu.memory_space<vmem>>, %arg4: memref<1x1x128xf32, #tpu.memory_space<vmem>>, %arg5: memref<8x128xf32, #tpu.memory_space<vmem>>, %arg6: memref<8x128xf32, #tpu.memory_space<vmem>>) attributes {dimension_semantics = [#tpu.dimension_semantics<parallel>, #tpu.dimension_semantics<arbitrary>], iteration_bounds = array<i64: 1, 3>, scalar_prefetch = 0 : i64, scratch_operands = 1 : i64, tpu.core_type = #tpu.core_type<tc>, window_params = [{transform_indices = @transform_0, window_bounds = array<i64: 8, 128>}, {transform_indices = @transform_1, window_bounds = array<i64: 1, 128, 128>}, {transform_indices = @transform_2, window_bounds = array<i64: 1, 1, 128>}, {transform_indices = @transform_3, window_bounds = array<i64: 8, 128>}]} {
    %c0_i32 = arith.constant 0 : i32
    %0 = arith.cmpi eq, %arg1, %c0_i32 : i32
    %1 = arith.extui %0 : i1 to i32
    %c0_i32_0 = arith.constant 0 : i32
    %2 = arith.cmpi ne, %1, %c0_i32_0 : i32
    scf.if %2 {
      %c0_11 = arith.constant 0 : index
      %c0_12 = arith.constant 0 : index
      %18 = vector.load %arg2[%c0_11, %c0_12] : memref<8x128xf32, #tpu.memory_space<vmem>>, vector<8x128xf32>
      %c0_13 = arith.constant 0 : index
      %c0_14 = arith.constant 0 : index
      %19 = vector.load %arg6[%c0_13, %c0_14] : memref<8x128xf32, #tpu.memory_space<vmem>>, vector<8x128xf32>
      tpu.vector_store %arg6[%c0_13, %c0_14], %18 {strides = array<i32>} : memref<8x128xf32, #tpu.memory_space<vmem>>, vector<8x128xf32>,
    } else {
    }
    %c0 = arith.constant 0 : index
    %c0_1 = arith.constant 0 : index
    %3 = vector.load %arg6[%c0, %c0_1] : memref<8x128xf32, #tpu.memory_space<vmem>>, vector<8x128xf32>
    %4 = arith.truncf %3 : vector<8x128xf32> to vector<8x128xbf16>
    %c0_2 = arith.constant 0 : index
    %c0_3 = arith.constant 0 : index
    %c0_4 = arith.constant 0 : index
    %5 = vector.load %arg3[%c0_2, %c0_3, %c0_4] : memref<1x128x128xbf16, #tpu.memory_space<vmem>>, vector<1x128x128xbf16>
    %6 = vector.shape_cast %5 : vector<1x128x128xbf16> to vector<128x128xbf16>
    %cst = arith.constant dense<0.000000e+00> : vector<8x128xf32>
    %7 = tpu.matmul %4, %6, %cst {dimension_numbers = #tpu.dot_dimension_numbers<[1], [0], [0], [1], [0, 0, 1, 1], [], []>} : vector<8x128xbf16>, vector<128x128xbf16>, vector<8x128xf32> -> vector<8x128xf32>
    %c0_5 = arith.constant 0 : index
    %c0_6 = arith.constant 0 : index
    %c0_7 = arith.constant 0 : index
    %8 = vector.load %arg4[%c0_5, %c0_6, %c0_7] : memref<1x1x128xf32, #tpu.memory_space<vmem>>, vector<1x1x128xf32>
    %9 = vector.shape_cast %8 : vector<1x1x128xf32> to vector<1x128xf32>
    %10 = vector.broadcast %9 : vector<1x128xf32> to vector<8x128xf32>
    %11 = arith.addf %7, %10 : vector<8x128xf32>
    %c2_i32 = arith.constant 2 : i32
    %12 = arith.cmpi slt, %arg1, %c2_i32 : i32
    %13 = arith.extui %12 : i1 to i32
    %c0_i32_8 = arith.constant 0 : i32
    %14 = arith.cmpi ne, %13, %c0_i32_8 : i32
    scf.if %14 {
      %cst_11 = arith.constant 0.000000e+00 : f32
      %18 = vector.broadcast %cst_11 : f32 to vector<8x128xf32>
      %19 = arith.maximumf %11, %18 : vector<8x128xf32>
      %c0_12 = arith.constant 0 : index
      %c0_13 = arith.constant 0 : index
      %20 = vector.load %arg6[%c0_12, %c0_13] : memref<8x128xf32, #tpu.memory_space<vmem>>, vector<8x128xf32>
      tpu.vector_store %arg6[%c0_12, %c0_13], %19 {strides = array<i32>} : memref<8x128xf32, #tpu.memory_space<vmem>>, vector<8x128xf32>,
    } else {
    }
    %c2_i32_9 = arith.constant 2 : i32
    %15 = arith.cmpi eq, %arg1, %c2_i32_9 : i32
    %16 = arith.extui %15 : i1 to i32
    %c0_i32_10 = arith.constant 0 : i32
    %17 = arith.cmpi ne, %16, %c0_i32_10 : i32
    scf.if %17 {
      %c0_11 = arith.constant 0 : index
      %c0_12 = arith.constant 0 : index
      %18 = vector.load %arg5[%c0_11, %c0_12] : memref<8x128xf32, #tpu.memory_space<vmem>>, vector<8x128xf32>
      tpu.vector_store %arg5[%c0_11, %c0_12], %11 {strides = array<i32>} : memref<8x128xf32, #tpu.memory_space<vmem>>, vector<8x128xf32>,
    } else {
    }
    return
  }
  func.func @transform_0(%arg0: i32, %arg1: i32) -> (i32, i32) {
    %c0_i32 = arith.constant 0 : i32
    %c0_i32_0 = arith.constant 0 : i32
    return %arg0, %c0_i32 : i32, i32
  }
  func.func @transform_1(%arg0: i32, %arg1: i32) -> (i32, i32, i32) {
    %c0_i32 = arith.constant 0 : i32
    %c0_i32_0 = arith.constant 0 : i32
    %c0_i32_1 = arith.constant 0 : i32
    return %arg1, %c0_i32, %c0_i32_0 : i32, i32, i32
  }
  func.func @transform_2(%arg0: i32, %arg1: i32) -> (i32, i32, i32) {
    %c0_i32 = arith.constant 0 : i32
    %c0_i32_0 = arith.constant 0 : i32
    %c0_i32_1 = arith.constant 0 : i32
    return %arg1, %c0_i32, %c0_i32_0 : i32, i32, i32
  }
  func.func @transform_3(%arg0: i32, %arg1: i32) -> (i32, i32) {
    %c0_i32 = arith.constant 0 : i32
    %c0_i32_0 = arith.constant 0 : i32
    return %arg0, %c0_i32 : i32, i32
  }
}

</mosaic_0001>

<llo_original>
// kernel: _forward_impl.1
$region0: #{_forward_impl.1}
  #allocation0 [shape = 'u32[]', space=smem, size = 0x4, offset = 0x4, fixed_abs, tag = 'smem constant byte address 0x4 - core index']
  #allocation1 [shape = 'u32[144,128]{1,0:T(1,128)}', space=vmem, size = 0x12000, scoped, tag = 'internal scratch']
  #allocation2 [shape = 'f32[8,128]{1,0:T(8,128)}', space=vmem, size = 0x1000, scoped, tag = 'scratch operand']
  %s0 = inlined_call_operand.vmem [shape: f32[8,128], index: 0, kind: input, shape index: {}]
  %s1 = inlined_call_operand.hbm [shape: bf16[3,128,128], index: 1, kind: input, shape index: {}]
  %s2 = inlined_call_operand.vmem [shape: f32[3,1,128], index: 2, kind: input, shape index: {}]
  %s3 = inlined_call_operand.hbm [shape: f32[8,128], index: 3, kind: output, shape index: {}]
  %s4 = sld [smem:[#allocation0]]
  $region61: #{_forward_impl.1} parent=0
    _
  %s6 = ssub.s32 1, %s4
  %s7 = scalar_select 0, %s6, %s4
  $region1: #{_forward_impl.1} parent=0
    #allocation3 [shape = 'u8[65536]{0}', space=vmem, size = 0x10000, scoped, tag = 'input window, operand 1']
    #allocation4 [shape = 's32[2]{0}', space=sflag, size = 0x8, scoped, tag = 'scoped memory for _forward_impl.1']
    #allocation5 [shape = 's32[2]{0}', space=sflag, size = 0x8, scoped, tag = 'scoped memory for _forward_impl.1']
    #allocation6 [shape = 'u8[4096]{0}', space=vmem, size = 0x1000, scoped, tag = 'output window, operand 0, single buffered']
    %8 = vsyncpa [#allocation4], 0
    %s9 = scalar_lea.sflag [#allocation4], 1
    %10 = vsyncpa %s9, 0
    %11 = vsyncpa [#allocation5], 0
    loop: start=0, step=1, limit=5
    $region2: #{_forward_impl.1} parent=1 // loop_pre_header
      _
    $region3: #{_forward_impl.1} parent=1 // loop_header
      %s13 = sphi 0, %s17
      %p14 = scmp.ge.s32.totalorder %s13, 5
      %s20 = sphi 0, %s32
      %s21 = sphi 0, %s28
      %s22 = sphi 0, %s20
      %s23 = sphi 0, %s21
      %s24 = sphi 0, %s22
      %s25 = sphi 0, %s23
      %s35 = sphi 0, %s37
      %s38 = sphi 0, %s35
      %s39 = sphi 0, %s38
      %s55 = sphi 0, %s39
      %s61 = sphi 0, %s63
      %s64 = sphi 0, %s61
      %s65 = sphi 0, %s64
      %s81 = sphi 0, %s65
      %s87 = sphi 0, %s89
      %s90 = sphi 0, %s87
      %s91 = sphi 0, %s90
      %s107 = sphi 0, %s91
      %s113 = sphi 0, %s115
      %s116 = sphi 0, %s113
      %s117 = sphi 0, %s116
      %s133 = sphi 0, %s117
    $region4: #{_forward_impl.1} parent=1 // loop_header_branch
      %16 = sbr.rel (%p14) target = $region8
    $region5: #{_forward_impl.1} parent=1 // loop_body
      %s18 = ssub.s32 %s13, 1
      %s19 = ssub.s32 %s13, 2
      %s26 = sadd.s32 1, %s21
      %p27 = scmp.ge.s32.totalorder %s26, 3
      %s28 = scalar_select %p27, 0, %s26
      %s29 = sadd.s32 1, %s20
      %s30 = scalar_select %p27, %s29, %s20
      %p31 = scmp.ge.s32.totalorder %s30, 1
      %s32 = scalar_select %p31, 0, %s30
      %s33 = ssub.s32 %s20, %s32
      %p34 = scmp.eq.s32.totalorder %s33, 0
      %s36 = sadd.s32 %s35, 1
      %s37 = scalar_select %p34, %s35, %s36
      %p40 = pneg %p34
      %p41 = scmp.eq.s32.totalorder %s13, 2
      %p42 = por %p40, %p41
      %p43 = scmp.ne.s32.totalorder %s35, %s38
      %p44 = scmp.eq.s32.totalorder %s13, 0
      %p45 = por %p43, %p44
      %p46 = scmp.ne.s32.totalorder %s35, %s38
      %p47 = scmp.eq.s32.totalorder %s18, 2
      %p48 = por %p46, %p47
      %p49 = scmp.ne.s32.totalorder %s38, %s39
      %p50 = scmp.eq.s32.totalorder %s18, 0
      %p51 = por %p49, %p50
      %p52 = scmp.ne.s32.totalorder %s38, %s39
      %p53 = scmp.eq.s32.totalorder %s19, 2
      %p54 = por %p52, %p53
      %p56 = scmp.ne.s32.totalorder %s39, %s55
      %p57 = scmp.eq.s32.totalorder %s19, 0
      %p58 = por %p56, %p57
      %s59 = ssub.s32 %s21, %s28
      %p60 = scmp.eq.s32.totalorder %s59, 0
      %s62 = sadd.s32 %s61, 1
      %s63 = scalar_select %p60, %s61, %s62
      %p66 = pneg %p60
      %p67 = scmp.eq.s32.totalorder %s13, 2
      %p68 = por %p66, %p67
      %p69 = scmp.ne.s32.totalorder %s61, %s64
      %p70 = scmp.eq.s32.totalorder %s13, 0
      %p71 = por %p69, %p70
      %p72 = scmp.ne.s32.totalorder %s61, %s64
      %p73 = scmp.eq.s32.totalorder %s18, 2
      %p74 = por %p72, %p73
      %p75 = scmp.ne.s32.totalorder %s64, %s65
      %p76 = scmp.eq.s32.totalorder %s18, 0
      %p77 = por %p75, %p76
      %p78 = scmp.ne.s32.totalorder %s64, %s65
      %p79 = scmp.eq.s32.totalorder %s19, 2
      %p80 = por %p78, %p79
      %p82 = scmp.ne.s32.totalorder %s65, %s81
      %p83 = scmp.eq.s32.totalorder %s19, 0
      %p84 = por %p82, %p83
      %s85 = ssub.s32 %s21, %s28
      %p86 = scmp.eq.s32.totalorder %s85, 0
      %s88 = sadd.s32 %s87, 1
      %s89 = scalar_select %p86, %s87, %s88
      %p92 = pneg %p86
      %p93 = scmp.eq.s32.totalorder %s13, 2
      %p94 = por %p92, %p93
      %p95 = scmp.ne.s32.totalorder %s87, %s90
      %p96 = scmp.eq.s32.totalorder %s13, 0
      %p97 = por %p95, %p96
      %p98 = scmp.ne.s32.totalorder %s87, %s90
      %p99 = scmp.eq.s32.totalorder %s18, 2
      %p100 = por %p98, %p99
      %p101 = scmp.ne.s32.totalorder %s90, %s91
      %p102 = scmp.eq.s32.totalorder %s18, 0
      %p103 = por %p101, %p102
      %p104 = scmp.ne.s32.totalorder %s90, %s91
      %p105 = scmp.eq.s32.totalorder %s19, 2
      %p106 = por %p104, %p105
      %p108 = scmp.ne.s32.totalorder %s91, %s107
      %p109 = scmp.eq.s32.totalorder %s19, 0
      %p110 = por %p108, %p109
      %s111 = ssub.s32 %s20, %s32
      %p112 = scmp.eq.s32.totalorder %s111, 0
      %s114 = sadd.s32 %s113, 1
      %s115 = scalar_select %p112, %s113, %s114
      %p118 = pneg %p112
      %p119 = scmp.eq.s32.totalorder %s13, 2
      %p120 = por %p118, %p119
      %p121 = scmp.ne.s32.totalorder %s113, %s116
      %p122 = scmp.eq.s32.totalorder %s13, 0
      %p123 = por %p121, %p122
      %p124 = scmp.ne.s32.totalorder %s113, %s116
      %p125 = scmp.eq.s32.totalorder %s18, 2
      %p126 = por %p124, %p125
      %p127 = scmp.ne.s32.totalorder %s116, %s117
      %p128 = scmp.eq.s32.totalorder %s18, 0
      %p129 = por %p127, %p128
      %p130 = scmp.ne.s32.totalorder %s116, %s117
      %p131 = scmp.eq.s32.totalorder %s19, 2
      %p132 = por %p130, %p131
      %p134 = scmp.ne.s32.totalorder %s117, %s133
      %p135 = scmp.eq.s32.totalorder %s19, 0
      %p136 = por %p134, %p135
      %p137 = scmp.le.s32.totalorder 1, %s13
      %p138 = scmp.lt.s32.totalorder %s13, 4
      %p139 = pnand %p137, %p138
      %p140 = pneg %p139
      // Predicated region
      $region9: #{_forward_impl.1} parent=5 // pred_check
        _
      $region10: #{_forward_impl.1} parent=5 // pred_check_branch
        %142 = sbr.rel (%p139) target = $region12
      $region11: #{_forward_impl.1} parent=5 // pred_region
        %s143 = ssub.s32 %s13, 1
        // Predicated region
        $region13: #{_forward_impl.1} parent=11 // pred_check
          %p144 = pneg %p51
        $region14: #{_forward_impl.1} parent=11 // pred_check_branch
          %146 = sbr.rel (%p144) target = $region16
        $region15: #{_forward_impl.1} parent=11 // pred_region
          %p147 = scmp.lt.s32.totalorder %s22, 0
          %s148 = scalar_select %p147, %s22, 0
          %s149 = smul.addr %s148, 8
          %s150 = scalar_lea.vmem %s0, %s149
        $region16: #{_forward_impl.1} parent=11 // pred_fallthru
          _
      $region12: #{_forward_impl.1} parent=5 // pred_fallthru
        _
      %p151 = scmp.lt.s32.totalorder %s13, 3
      // Predicated region
      $region17: #{_forward_impl.1} parent=5 // pred_check
        %p152 = pneg %p151
      $region18: #{_forward_impl.1} parent=5 // pred_check_branch
        %154 = sbr.rel (%p152) target = $region20
      $region19: #{_forward_impl.1} parent=5 // pred_region
        // Predicated region
        $region21: #{_forward_impl.1} parent=19 // pred_check
          %p155 = pneg %p71
        $region22: #{_forward_impl.1} parent=19 // pred_check_branch
          %157 = sbr.rel (%p155) target = $region24
        $region23: #{_forward_impl.1} parent=19 // pred_region
          %s158 = sand.u32 %s61, 1
          %s159 = scalar_lea.sflag [#allocation4], %s158
          %s160 = sand.u32 %s61, 1
          %s161 = smul.addr %s160, 64
          %s162 = scalar_lea.vmem [#allocation3], %s161
          %s164 = ssub.s32 1024, 1024
          %165 = vsyncadd %s159, %s164
          %s166 = smul.addr %s21, 16
          %s167 = smul.addr %s166, 64
          %s168 = scalar_lea.hbm %s1, %s167
          %s169 = sshll.u32 %s162, 4
          %s170 = int_to_ptr.vmem [resolvable:$true] %s169
          %175 = dma.hbm_to_vmem [thread:$0]  %s168, 1024, %s170, %s159, 64, 64, 4
        $region24: #{_forward_impl.1} parent=19 // pred_fallthru
          _
        // Predicated region
        $region25: #{_forward_impl.1} parent=19 // pred_check
          %p176 = pneg %p97
        $region26: #{_forward_impl.1} parent=19 // pred_check_branch
          %178 = sbr.rel (%p176) target = $region28
        $region27: #{_forward_impl.1} parent=19 // pred_region
          %p179 = scmp.lt.s32.totalorder %s21, 2
          %s180 = scalar_select %p179, %s21, 2
          %s181 = scalar_lea.vmem %s2, %s180
        $region28: #{_forward_impl.1} parent=19 // pred_fallthru
          _
      $region20: #{_forward_impl.1} parent=5 // pred_fallthru
        _
      %p182 = scmp.le.s32.totalorder 1, %s13
      %p183 = scmp.lt.s32.totalorder %s13, 4
      %p184 = pnand %p182, %p183
      %p185 = pneg %p184
      // Predicated region
      $region29: #{_forward_impl.1} parent=5 // pred_check
        _
      $region30: #{_forward_impl.1} parent=5 // pred_check_branch
        %187 = sbr.rel (%p184) target = $region32
      $region31: #{_forward_impl.1} parent=5 // pred_region
        %s188 = ssub.s32 %s13, 1
        %s189 = sand.u32 %s64, 1
        %s190 = scalar_lea.sflag [#allocation4], %s189
        %s191 = sand.u32 %s64, 1
        %s192 = smul.addr %s191, 64
        %s193 = scalar_lea.vmem [#allocation3], %s192
        // Predicated region
        $region33: #{_forward_impl.1} parent=31 // pred_check
          %p194 = pneg %p77
        $region34: #{_forward_impl.1} parent=31 // pred_check_branch
          %196 = sbr.rel (%p194) target = $region36
        $region35: #{_forward_impl.1} parent=31 // pred_region
          %197 = dma.done %s190, 1024
        $region36: #{_forward_impl.1} parent=31 // pred_fallthru
          _
        %p198 = scmp.lt.s32.totalorder %s22, 0
        %s199 = scalar_select %p198, %s22, 0
        %s200 = smul.addr %s199, 8
        %s201 = scalar_lea.vmem %s0, %s200
        %p202 = pneg %p51
        %p203 = pneg %p48
        %s204 = sand.u32 %s64, 1
        %s205 = scalar_lea.sflag [#allocation4], %s204
        %s206 = sand.u32 %s64, 1
        %s207 = smul.addr %s206, 64
        %s208 = scalar_lea.vmem [#allocation3], %s207
        %p209 = pneg %p77
        %p210 = pneg %p74
        %p211 = scmp.lt.s32.totalorder %s23, 2
        %s212 = scalar_select %p211, %s23, 2
        %s213 = scalar_lea.vmem %s2, %s212
        %p214 = pneg %p103
        %p215 = pneg %p100
        %p216 = pneg %p129
        %p217 = pneg %p126
        %p218 = scmp.lt.s32.totalorder %s22, 0
        %s219 = scalar_select %p218, %s22, 0
        %s220 = smul.addr %s219, 8
        %s221 = scalar_lea.vmem %s0, %s220
        %p222 = scmp.lt.s32.totalorder %s23, 2
        %s223 = scalar_select %p222, %s23, 2
        %s224 = scalar_lea.vmem %s2, %s223
        %p226 = scmp.eq.s32.totalorder %s23, 0
        // Predicated region
        $region37: #{_forward_impl.1} parent=31 // pred_check
          %p227 = pneg %p226
        $region38: #{_forward_impl.1} parent=31 // pred_check_branch
          %229 = sbr.rel (%p227) target = $region40
        $region39: #{_forward_impl.1} parent=31 // pred_region
          %v230 = vld [vmem:[%s221] sm:$0xff]
          %231 = vst [vmem:[#allocation2] sm:$0xff] %v230
        $region40: #{_forward_impl.1} parent=31 // pred_fallthru
          _
        %v232 = vld [vmem:[#allocation2] sm:$0xff]
        %v233 = vpack.c.bf16 %v232, %v232
        %v234 = vld [vmem:[%s193] sm:$0xf]
        %v235 = vld [vmem:[%s193 + $0x4] sm:$0xf]
        %v236 = vld [vmem:[%s193 + $0x8] sm:$0xf]
        %v237 = vld [vmem:[%s193 + $0xc] sm:$0xf]
        %v238 = vld [vmem:[%s193 + $0x10] sm:$0xf]
        %v239 = vld [vmem:[%s193 + $0x14] sm:$0xf]
        %v240 = vld [vmem:[%s193 + $0x18] sm:$0xf]
        %v241 = vld [vmem:[%s193 + $0x1c] sm:$0xf]
        %v242 = vld [vmem:[%s193 + $0x20] sm:$0xf]
        %v243 = vld [vmem:[%s193 + $0x24] sm:$0xf]
        %v244 = vld [vmem:[%s193 + $0x28] sm:$0xf]
        %v245 = vld [vmem:[%s193 + $0x2c] sm:$0xf]
        %v246 = vld [vmem:[%s193 + $0x30] sm:$0xf]
        %v247 = vld [vmem:[%s193 + $0x34] sm:$0xf]
        %v248 = vld [vmem:[%s193 + $0x38] sm:$0xf]
        %v249 = vld [vmem:[%s193 + $0x3c] sm:$0xf]
        %v250 = vld [vmem:[%s224] sm:$0x1]
        %v252 = vlaneseq
        %v253 = vshrl.u32 %v252, 7
        %v254 = vsub.s32 0, %v253
        %v255 = vrot.slane %v250, %v254
        %v273 = vunpack.c.l.b16 %v234
        %v274 = vunpack.c.l.b16 %v235
        %v275 = vunpack.c.l.b16 %v236
        %v276 = vunpack.c.l.b16 %v237
        %v277 = vunpack.c.l.b16 %v238
        %v278 = vunpack.c.l.b16 %v239
        %v279 = vunpack.c.l.b16 %v240
        %v280 = vunpack.c.l.b16 %v241
        %v281 = vunpack.c.l.b16 %v242
        %v282 = vunpack.c.l.b16 %v243
        %v283 = vunpack.c.l.b16 %v244
        %v284 = vunpack.c.l.b16 %v245
        %v285 = vunpack.c.l.b16 %v246
        %v286 = vunpack.c.l.b16 %v247
        %v287 = vunpack.c.l.b16 %v248
        %v288 = vunpack.c.l.b16 %v249
        %v289 = vpack.c.b16 %v274, %v273
        %v290 = vpack.c.b16 %v276, %v275
        %v291 = vpack.c.b16 %v278, %v277
        %v292 = vpack.c.b16 %v280, %v279
        %v293 = vpack.c.b16 %v282, %v281
        %v294 = vpack.c.b16 %v284, %v283
        %v295 = vpack.c.b16 %v286, %v285
        %v296 = vpack.c.b16 %v288, %v287
        %305 = vmatprep.subr.bf16.mxu0 0
        %306 = vmatpush1.bf16.msra.mxu0 %v289
        %307 = vmatprep.subr.bf16.mxu0 0
        %308 = vmatpush1.bf16.msra.mxu0 %v290
        %309 = vmatprep.subr.bf16.mxu0 0
        %310 = vmatpush1.bf16.msra.mxu0 %v291
        %311 = vmatprep.subr.bf16.mxu0 0
        %312 = vmatpush1.bf16.msra.mxu0 %v292
        %313 = vmatprep.subr.bf16.mxu0 0
        %314 = vmatpush1.bf16.msra.mxu0 %v293
        %315 = vmatprep.subr.bf16.mxu0 0
        %316 = vmatpush1.bf16.msra.mxu0 %v294
        %317 = vmatprep.subr.bf16.mxu0 0
        %318 = vmatpush1.bf16.msra.mxu0 %v295
        %319 = vmatprep.subr.bf16.mxu0 0
        %320 = vmatpush1.bf16.msra.mxu0 %v296
        %321 = vmatprep.subr.bf16.mxu0 0
        %322 = vmatpush1.bf16.msra.mxu0 0
        %323 = vmatprep.subr.bf16.mxu0 0
        %324 = vmatpush1.bf16.msra.mxu0 0
        %325 = vmatprep.subr.bf16.mxu0 0
        %326 = vmatpush1.bf16.msra.mxu0 0
        %327 = vmatprep.subr.bf16.mxu0 0
        %328 = vmatpush1.bf16.msra.mxu0 0
        %329 = vmatprep.subr.bf16.mxu0 0
        %330 = vmatpush1.bf16.msra.mxu0 0
        %331 = vmatprep.subr.bf16.mxu0 0
        %332 = vmatpush1.bf16.msra.mxu0 0
        %333 = vmatprep.subr.bf16.mxu0 0
        %334 = vmatpush1.bf16.msra.mxu0 0
        %335 = vmatprep.subr.bf16.mxu0 0
        %336 = vmatpush1.bf16.msra.mxu0 0
        %337 = vmatprep.mubr.bf16.mxu0 0
        %338 = vmatmul.mubr.bf16.gmra.mrb[0].mxu0 %v233
        %v339 = vpop.f32.mrb[0].mxu0
        %v340 = vadd.f32 %v255, %v339
        %v341 = vpop.f32.mrb[0].mxu0
        %v342 = vpop.f32.mrb[0].mxu0
        %v343 = vpop.f32.mrb[0].mxu0
        %344 = vdwg.mxu0
        %p345 = scmp.lt.s32.totalorder %s23, 2
        // Predicated region
        $region41: #{_forward_impl.1} parent=31 // pred_check
          %p346 = pneg %p345
        $region42: #{_forward_impl.1} parent=31 // pred_check_branch
          %348 = sbr.rel (%p346) target = $region44
        $region43: #{_forward_impl.1} parent=31 // pred_region
          %v349 = vmax.f32 %v340, 0.0
          %350 = vst [vmem:[#allocation2] sm:$0xff] %v349
        $region44: #{_forward_impl.1} parent=31 // pred_fallthru
          _
        %p351 = scmp.eq.s32.totalorder %s23, 2
        // Predicated region
        $region45: #{_forward_impl.1} parent=31 // pred_check
          %p352 = pneg %p351
        $region46: #{_forward_impl.1} parent=31 // pred_check_branch
          %354 = sbr.rel (%p352) target = $region48
        $region47: #{_forward_impl.1} parent=31 // pred_region
          %355 = vst [vmem:[#allocation6] sm:$0xff] %v340
        $region48: #{_forward_impl.1} parent=31 // pred_fallthru
          _
        // Predicated region
        $region49: #{_forward_impl.1} parent=31 // pred_check
          %p356 = pneg %p126
        $region50: #{_forward_impl.1} parent=31 // pred_check_branch
          %358 = sbr.rel (%p356) target = $region52
        $region51: #{_forward_impl.1} parent=31 // pred_region
          %s360 = ssub.s32 128, 128
          %361 = vsyncadd [#allocation5], %s360
          %s362 = smul.addr %s22, 128
          %s363 = scalar_lea.hbm %s3, %s362
          %s365 = sshll.u32 [#allocation6], 4
          %s366 = int_to_ptr.vmem [resolvable:$true] %s365
          %368 = dma.vmem_to_hbm [thread:$0]  %s366, 128, %s363, [#allocation5]
        $region52: #{_forward_impl.1} parent=31 // pred_fallthru
          _
        // Predicated region
        $region53: #{_forward_impl.1} parent=31 // pred_check
          %p369 = pneg %p126
        $region54: #{_forward_impl.1} parent=31 // pred_check_branch
          %371 = sbr.rel (%p369) target = $region56
        $region55: #{_forward_impl.1} parent=31 // pred_region
          %372 = dma.done [#allocation5], 128
        $region56: #{_forward_impl.1} parent=31 // pred_fallthru
          _
      $region32: #{_forward_impl.1} parent=5 // pred_fallthru
        _
      %p373 = scmp.le.s32.totalorder 2, %s13
      // Predicated region
      $region57: #{_forward_impl.1} parent=5 // pred_check
        %p374 = pneg %p373
      $region58: #{_forward_impl.1} parent=5 // pred_check_branch
        %376 = sbr.rel (%p374) target = $region60
      $region59: #{_forward_impl.1} parent=5 // pred_region
        %s377 = ssub.s32 %s13, 2
      $region60: #{_forward_impl.1} parent=5 // pred_fallthru
        _
    $region6: #{_forward_impl.1} parent=1 // loop_footer
      %s17 = sadd.s32 1, %s13
    $region7: #{_forward_impl.1} parent=1 // loop_footer_branch
      %12 = sbr.rel target = $region3
    $region8: #{_forward_impl.1} parent=1 // loop_exit
      _
    %378 = vsyncpa [#allocation4], 1
    %s379 = scalar_lea.sflag [#allocation4], 1
    %380 = vsyncpa %s379, 1
    %381 = vsyncpa [#allocation5], 1
    %s382 = scalar_lea.sflag [#allocation5], 1
    %383 = vsyncpa %s382, 1

</llo_original>
